<compile_context>
chip_gen: v5e
topology: v5e:2x2
jax: 0.10.0
libtpu: 0.0.40
codegen_flags: <defaults>
</compile_context>

<pallas_src>
import functools

import jax
import jax.numpy as jnp
from jax.experimental import pallas as pl
from jax.experimental.pallas import tpu as pltpu


def _round_up(a, b):
    return (a + b - 1) // b * b


def _vmem_limit_bytes():
    """Generation-aware scoped-VMEM limit (~3/4 of physical, 32 MiB fallback)."""
    try:
        cap = int(pltpu.get_tpu_info().vmem_capacity_bytes)
    except Exception:
        return 32 * 1024 * 1024
    return max(32 * 1024 * 1024, min(cap * 3 // 4, 96 * 1024 * 1024))


def _pow_neg_beta(y, beta):
    """Compute y ** (-beta) for y > 0 without pow + divide chains."""
    if beta == 0.75:
        # y^(-3/4) = rsqrt(y) * rsqrt(sqrt(y)),  sqrt(y) = y * rsqrt(y)
        r = jax.lax.rsqrt(y)           # y^(-1/2)   (EUP)
        s = y * r                      # y^(1/2)
        return r * jax.lax.rsqrt(s)    # y^(-1/2) * y^(-1/4)
    if beta == 1.0:
        return pl.reciprocal(y, approx=False)
    # Generic beta: exp(-beta * log(y)) -- two EUP ops, no divide.
    return jnp.exp(-beta * jnp.log(y))


# ---------------------------------------------------------------------------
# n == 1 fast path: the pooling is the identity, op is purely elementwise.
# ---------------------------------------------------------------------------
def _lrn_n1_kernel(x_ref, o_ref, *, k, alpha, beta):
    x = x_ref[...].astype(jnp.float32)
    y = (x * x) * alpha + k
    o_ref[...] = (x * _pow_neg_beta(y, beta)).astype(o_ref.dtype)


def _lrn_elementwise(x, *, k, alpha, beta):
    orig_shape, orig_dtype = x.shape, x.dtype
    itemsize = jnp.dtype(orig_dtype).itemsize
    total = x.size

    flat = x.reshape(-1)                     # contiguous reshape: no HBM copy
    pad = (-total) % 128
    if pad:                                  # copy only when strictly needed
        flat = jnp.pad(flat, (0, pad))
    rows = (total + pad) // 128
    x2d = flat.reshape(rows, 128)

    # Sublane alignment for the packed layout of the input dtype.
    row_align = 8 * max(1, 4 // itemsize)    # f32: 8, bf16: 16, int8/fp8: 32
    vmem_limit = _vmem_limit_bytes()
    # VMEM budget: 2x double-buffered in + out blocks (input dtype) plus ~6
    # f32-sized in-kernel temporaries.
    cap_rows = max(row_align,
                   int(vmem_limit * 0.75) // (128 * (4 * itemsize + 6 * 4)))
    target_rows = (4 * 1024 * 1024) // (128 * itemsize)  # ~4 MiB HBM per block

    if rows < row_align:
        block_rows = rows                    # block == full array dims
    else:
        block_rows = min(target_rows, cap_rows)
        if rows >= 2048:
            # >= 4 grid steps (>= 2 per TensorCore on v7x) when there is work.
            block_rows = min(block_rows, _round_up(pl.cdiv(rows, 4), row_align))
        block_rows = min(block_rows, rows)
        block_rows = max(row_align, block_rows // row_align * row_align)

    out = pl.pallas_call(
        functools.partial(_lrn_n1_kernel, k=k, alpha=alpha, beta=beta),
        out_shape=jax.ShapeDtypeStruct((rows, 128), orig_dtype),
        grid=(pl.cdiv(rows, block_rows),),          # ragged last block OK
        in_specs=[pl.BlockSpec((block_rows, 128), lambda i: (i, 0))],
        out_specs=pl.BlockSpec((block_rows, 128), lambda i: (i, 0)),
        compiler_params=pltpu.CompilerParams(
            dimension_semantics=("parallel",),
            vmem_limit_bytes=vmem_limit),
    )(x2d)

    if pad:
        return out.reshape(-1)[:total].reshape(orig_shape)
    return out.reshape(orig_shape)


# ---------------------------------------------------------------------------
# n > 1, ACROSS_CHANNELS=True: zero-padded sliding window over channels,
# implemented as a banded matmul on the MXU.
# ---------------------------------------------------------------------------
def _lrn_xchan_kernel(x_ref, o_ref, *, n, k, alpha, beta):
    # Block: (C, TILE) = (all channels, one spatial tile) of one batch element.
    x = x_ref[...].astype(jnp.float32)
    C = x.shape[0]
    p = (n - 1) // 2

    # 0/1 band matrix band[i, j] = (|i - j| <= p).  The zero-padded sliding
    # channel-window sum becomes one MXU matmul, keeping the VALU slot free so
    # the kernel stays HBM-bound.  Everything stays f32 (no bf16 downcast).
    ri = jax.lax.broadcasted_iota(jnp.int32, (C, C), 0)
    ci = jax.lax.broadcasted_iota(jnp.int32, (C, C), 1)
    d = ri - ci
    band = jnp.logical_and(d <= p, d >= -p).astype(jnp.float32)

    sq = x * x
    acc = jnp.dot(band, sq, preferred_element_type=jnp.float32)   # MXU
    y = acc * (alpha / float(n)) + k            # alpha * avg + k
    o_ref[...] = (x * _pow_neg_beta(y, beta)).astype(o_ref.dtype)


def _lrn_across_channels(x, *, n, k, alpha, beta):
    N, C, H, W = x.shape
    HW = H * W
    itemsize = jnp.dtype(x.dtype).itemsize

    vmem_limit = _vmem_limit_bytes()
    # Budget per spatial column: double-buffered in + out blocks (input dtype)
    # plus ~8 f32-sized in-kernel temporaries (cast, sq, Band@sq, y, pow ...).
    bytes_per_col = C * (4 * itemsize + 8 * 4)
    max_tile = max(128, (int(vmem_limit * 0.75) // bytes_per_col) // 128 * 128)

    # Full spatial extent if it fits (always a legal block: equals full dim),
    # otherwise a lane-aligned tile with a ragged last block.
    tile = HW if HW <= max_tile else max_tile
    # Ensure >= 4 total grid steps (megacore sharding + pipeline overlap on
    # v7x) whenever the spatial extent allows it.
    while N * pl.cdiv(HW, tile) < 4 and tile > 128:
        tile = max(128, (tile // 2) // 128 * 128)

    x3 = x.reshape(N, C, HW)                 # free; no wrapper pad/slice

    out = pl.pallas_call(
        functools.partial(_lrn_xchan_kernel, n=n, k=k, alpha=alpha, beta=beta),
        out_shape=jax.ShapeDtypeStruct((N, C, HW), x.dtype),
        grid=(N, pl.cdiv(HW, tile)),               # ragged last spatial block
        in_specs=[pl.BlockSpec((None, C, tile), lambda b, t: (b, 0, t))],
        out_specs=pl.BlockSpec((None, C, tile), lambda b, t: (b, 0, t)),
        compiler_params=pltpu.CompilerParams(
            dimension_semantics=("parallel", "parallel"),
            vmem_limit_bytes=vmem_limit),
    )(x3)
    return out.reshape(N, C, H, W)


def lrn_pallas(x, *, n=1, k=1.0, alpha=1.0, beta=0.75, across_channels=True):
    """Forward pass of the PyTorch LRN module (NCHW input)."""
    if x.ndim != 4:
        raise ValueError("expected NCHW input")
    if n == 1:
        # kernel_size=1 pooling is the identity in both modes -> elementwise.
        return _lrn_elementwise(x, k=k, alpha=alpha, beta=beta)
    if not across_channels:
        # TODO(synk): spatial AvgPool2d path (ACROSS_CHANNELS=False, n>1) not
        # implemented; the AlexNet module uses the cross-channel default.
        raise NotImplementedError("ACROSS_CHANNELS=False with n > 1")
    if n % 2 != 1:
        # Even n with padding (n-1)//2 would change the channel count in torch.
        raise ValueError("n must be odd")
    return _lrn_across_channels(x, n=n, k=k, alpha=alpha, beta=beta)


def _lrn_reference(x, *, n=1, k=1.0, alpha=1.0, beta=0.75):
    # Pure-JAX reference mirroring the PyTorch forward (ACROSS_CHANNELS=True).
    sq = x * x
    p = (n - 1) // 2
    C = x.shape[1]
    sq_pad = jnp.pad(sq, ((0, 0), (p, p), (0, 0), (0, 0)))
    acc = jnp.zeros_like(x)
    for j in range(n):
        acc = acc + sq_pad[:, j:j + C, :, :]
    div = jnp.power(acc / float(n) * alpha + k, beta)
    return x / div


if __name__ == "__main__":
    key = jax.random.PRNGKey(0)
    k1, k2, k3 = jax.random.split(key, 3)

    # 1) Module defaults (n=1, k=1.0, alpha=1.0, beta=0.75): elementwise path.
    x1 = jax.random.normal(k1, (2, 4, 16, 16), dtype=jnp.float32)
    out1 = jax.block_until_ready(lrn_pallas(x1))
    ref1 = _lrn_reference(x1)
    assert out1.shape == x1.shape and out1.dtype == x1.dtype
    assert jnp.allclose(out1, ref1, atol=1e-5, rtol=1e-5), "n=1 path mismatch"

    # 2) Cross-channel window (n=5) via the banded-matmul kernel.
    x2 = jax.random.normal(k2, (2, 8, 16, 16), dtype=jnp.float32)
    out2 = jax.block_until_ready(
        lrn_pallas(x2, n=5, k=2.0, alpha=1e-4, beta=0.75))
    ref2 = _lrn_reference(x2, n=5, k=2.0, alpha=1e-4, beta=0.75)
    assert out2.shape == x2.shape and out2.dtype == x2.dtype
    assert jnp.allclose(out2, ref2, atol=1e-5, rtol=1e-5), "n=5 path mismatch"

    # 3) Ragged spatial blocks (H*W=130, not a multiple of 128) + beta=1 path.
    x3 = jax.random.normal(k3, (1, 16, 10, 13), dtype=jnp.float32)
    out3 = jax.block_until_ready(
        lrn_pallas(x3, n=3, k=1.0, alpha=1e-3, beta=1.0))
    ref3 = _lrn_reference(x3, n=3, k=1.0, alpha=1e-3, beta=1.0)
    assert out3.shape == x3.shape and out3.dtype == x3.dtype
    assert jnp.allclose(out3, ref3, atol=1e-5, rtol=1e-5), "n=3 path mismatch"

    print("KERNEL_OK")
</pallas_src>

<mosaic_0001>
module attributes {stable_mosaic.version = 11 : i64} {
  func.func @_lrn_n1_kernel(%arg0: i32, %arg1: memref<16x128xf32, #tpu.memory_space<vmem>>, %arg2: memref<16x128xf32, #tpu.memory_space<vmem>>) attributes {dimension_semantics = [#tpu.dimension_semantics<parallel>], iteration_bounds = array<i64: 1>, scalar_prefetch = 0 : i64, scratch_operands = 0 : i64, tpu.core_type = #tpu.core_type<tc>, window_params = [{transform_indices = @transform_0, window_bounds = array<i64: 16, 128>}, {transform_indices = @transform_1, window_bounds = array<i64: 16, 128>}]} {
    %c0 = arith.constant 0 : index
    %c0_0 = arith.constant 0 : index
    %0 = vector.load %arg1[%c0, %c0_0] : memref<16x128xf32, #tpu.memory_space<vmem>>, vector<16x128xf32>
    %1 = arith.mulf %0, %0 : vector<16x128xf32>
    %cst = arith.constant 1.000000e+00 : f32
    %2 = vector.broadcast %cst : f32 to vector<16x128xf32>
    %3 = arith.mulf %1, %2 : vector<16x128xf32>
    %cst_1 = arith.constant 1.000000e+00 : f32
    %4 = vector.broadcast %cst_1 : f32 to vector<16x128xf32>
    %5 = arith.addf %3, %4 : vector<16x128xf32>
    %6 = math.rsqrt %5 : vector<16x128xf32>
    %7 = arith.mulf %5, %6 : vector<16x128xf32>
    %8 = math.rsqrt %7 : vector<16x128xf32>
    %9 = arith.mulf %6, %8 : vector<16x128xf32>
    %10 = arith.mulf %0, %9 : vector<16x128xf32>
    %c0_2 = arith.constant 0 : index
    %c0_3 = arith.constant 0 : index
    %11 = vector.load %arg2[%c0_2, %c0_3] : memref<16x128xf32, #tpu.memory_space<vmem>>, vector<16x128xf32>
    tpu.vector_store %arg2[%c0_2, %c0_3], %10 {strides = array<i32>} : memref<16x128xf32, #tpu.memory_space<vmem>>, vector<16x128xf32>,
    return
  }
  func.func @transform_0(%arg0: i32) -> (i32, i32) {
    %c0_i32 = arith.constant 0 : i32
    %c0_i32_0 = arith.constant 0 : i32
    return %arg0, %c0_i32 : i32, i32
  }
  func.func @transform_1(%arg0: i32) -> (i32, i32) {
    %c0_i32 = arith.constant 0 : i32
    %c0_i32_0 = arith.constant 0 : i32
    return %arg0, %c0_i32 : i32, i32
  }
}

</mosaic_0001>

<llo_original>
// kernel: tpu_custom_call.1
$region0: #{tpu_custom_call.1}
  #allocation0 [shape = 'u32[]', space=smem, size = 0x4, offset = 0x4, fixed_abs, tag = 'smem constant byte address 0x4 - core index']
  #allocation1 [shape = 'u32[72,128]{1,0:T(1,128)}', space=vmem, size = 0x9000, scoped, tag = 'internal scratch']
  %s0 = inlined_call_operand.hbm [shape: f32[16,128], index: 0, kind: input, shape index: {}]
  %s1 = inlined_call_operand.hbm [shape: f32[16,128], index: 1, kind: output, shape index: {}]
  %s2 = sld [smem:[#allocation0]]
  $region18: #{tpu_custom_call.1} parent=0
    _
  %s4 = ssub.s32 1, %s2
  %s5 = scalar_select 0, %s4, %s2
  $region1: #{tpu_custom_call.1} parent=0
    #allocation2 [shape = 'u8[8192]{0}', space=vmem, size = 0x2000, scoped, tag = 'input window, operand 0, single buffered']
    #allocation3 [shape = 's32[1]{0}', space=sflag, size = 0x4, scoped, tag = 'scoped memory for tpu_custom_call.1']
    #allocation4 [shape = 's32[1]{0}', space=sflag, size = 0x4, scoped, tag = 'scoped memory for tpu_custom_call.1']
    #allocation5 [shape = 'u8[8192]{0}', space=vmem, size = 0x2000, scoped, tag = 'output window, operand 0, single buffered']
    %6 = vsyncpa [#allocation3], 0
    %7 = vsyncpa [#allocation4], 0
    // Predicated region
    $region2: #{tpu_custom_call.1} parent=1 // pred_check
      _
    $region3: #{tpu_custom_call.1} parent=1 // pred_check_branch
      %9 = sbr.rel (0) target = $region5
    $region4: #{tpu_custom_call.1} parent=1 // pred_region
      %11 = vsyncadd [#allocation3], 0
      %s12 = sshll.u32 %s0, 4
      %s13 = int_to_ptr.hbm [resolvable:$true] %s12
      %s14 = sshll.u32 [#allocation2], 4
      %s15 = int_to_ptr.vmem [resolvable:$true] %s14
      %20 = dma.hbm_to_vmem [thread:$0]  %s13, 256, %s15, [#allocation3], 128, 128, 8
    $region5: #{tpu_custom_call.1} parent=1 // pred_fallthru
      _
    // Predicated region
    $region6: #{tpu_custom_call.1} parent=1 // pred_check
      _
    $region7: #{tpu_custom_call.1} parent=1 // pred_check_branch
      %22 = sbr.rel (0) target = $region9
    $region8: #{tpu_custom_call.1} parent=1 // pred_region
      %24 = dma.done [#allocation3], 256
    $region9: #{tpu_custom_call.1} parent=1 // pred_fallthru
      _
    %v25 = vld [vmem:[#allocation2] sm:$0xff]
    %v26 = vld [vmem:[#allocation2 + $0x8] sm:$0xff]
    %v27 = vmul.f32 %v25, %v25
    %v28 = vmul.f32 %v26, %v26
    %v29 = vadd.f32 %v27, 1.0
    %v30 = vadd.f32 %v28, 1.0
    %v31 = vrsqrt.pop %v29
    %v32 = vmul.f32 %v31, %v29
    %v33 = vmul.f32 %v32, %v31
    %v34 = vmul.f32 0.5, %v33
    %v35 = vsub.f32 1.5, %v34
    %v36 = vmul.f32 %v31, %v35
    %vm37 = vweird.f32 %v29
    %vm38 = vweird.f32 %v31
    %vm39 = vmor %vm37, %vm38
    %v40 = vsel %vm39, %v31, %v36
    %v41 = vrsqrt.pop %v30
    %v42 = vmul.f32 %v41, %v30
    %v43 = vmul.f32 %v42, %v41
    %v44 = vmul.f32 0.5, %v43
    %v45 = vsub.f32 1.5, %v44
    %v46 = vmul.f32 %v41, %v45
    %vm47 = vweird.f32 %v30
    %vm48 = vweird.f32 %v41
    %vm49 = vmor %vm47, %vm48
    %v50 = vsel %vm49, %v41, %v46
    %v51 = vmul.f32 %v29, %v40
    %v52 = vmul.f32 %v30, %v50
    %v53 = vrsqrt.pop %v51
    %v54 = vmul.f32 %v53, %v51
    %v55 = vmul.f32 %v54, %v53
    %v56 = vmul.f32 0.5, %v55
    %v57 = vsub.f32 1.5, %v56
    %v58 = vmul.f32 %v53, %v57
    %vm59 = vweird.f32 %v51
    %vm60 = vweird.f32 %v53
    %vm61 = vmor %vm59, %vm60
    %v62 = vsel %vm61, %v53, %v58
    %v63 = vrsqrt.pop %v52
    %v64 = vmul.f32 %v63, %v52
    %v65 = vmul.f32 %v64, %v63
    %v66 = vmul.f32 0.5, %v65
    %v67 = vsub.f32 1.5, %v66
    %v68 = vmul.f32 %v63, %v67
    %vm69 = vweird.f32 %v52
    %vm70 = vweird.f32 %v63
    %vm71 = vmor %vm69, %vm70
    %v72 = vsel %vm71, %v63, %v68
    %v73 = vmul.f32 %v40, %v62
    %v74 = vmul.f32 %v50, %v72
    %v75 = vmul.f32 %v25, %v73
    %v76 = vmul.f32 %v26, %v74
    %77 = vst [vmem:[#allocation5] sm:$0xff] %v75
    %78 = vst [vmem:[#allocation5 + $0x8] sm:$0xff] %v76
    // Predicated region
    $region10: #{tpu_custom_call.1} parent=1 // pred_check
      _
    $region11: #{tpu_custom_call.1} parent=1 // pred_check_branch
      %80 = sbr.rel (0) target = $region13
    $region12: #{tpu_custom_call.1} parent=1 // pred_region
      %82 = vsyncadd [#allocation4], 0
      %s83 = sshll.u32 [#allocation5], 4
      %s84 = int_to_ptr.vmem [resolvable:$true] %s83
      %s85 = sshll.u32 %s1, 4
      %s86 = int_to_ptr.hbm [resolvable:$true] %s85
      %91 = dma.vmem_to_hbm [thread:$0]  %s84, 256, %s86, [#allocation4], 128, 128, 8
    $region13: #{tpu_custom_call.1} parent=1 // pred_fallthru
      _
    // Predicated region
    $region14: #{tpu_custom_call.1} parent=1 // pred_check
      _
    $region15: #{tpu_custom_call.1} parent=1 // pred_check_branch
      %93 = sbr.rel (0) target = $region17
    $region16: #{tpu_custom_call.1} parent=1 // pred_region
      %95 = dma.done [#allocation4], 256
    $region17: #{tpu_custom_call.1} parent=1 // pred_fallthru
      _
    %96 = vsyncpa [#allocation3], 1
    %97 = vsyncpa [#allocation4], 1

</llo_original>
